<compile_context>
chip_gen: v6e
topology: v6e:2x2x1
jax: 0.10.0
libtpu: 0.0.40
codegen_flags: <defaults>
</compile_context>

<pallas_src>
import jax
import jax.numpy as jnp
from jax.experimental import pallas as pl
from jax.experimental.pallas import tpu as pltpu


def _round_up(n, m):
    return ((n + m - 1) // m) * m


def _fcc_kernel(x_ref, *refs):
    """Fused MLP forward.  refs = (*weight_refs(bf16), out_ref(f32))."""
    *w_refs, o_ref = refs
    h = x_ref[...]                                   # f32 activations
    # hidden layers: Linear (no bias) + ReLU
    for w_ref in w_refs[:-1]:
        h = jnp.dot(h.astype(jnp.bfloat16), w_ref[...],
                    preferred_element_type=jnp.float32)   # bf16 MXU, f32 acc
        h = jnp.maximum(h, 0.0)                           # ReLU kept in f32
    # logits layer: Linear (no bias), no activation; lane-dense (padded) store
    o_ref[...] = jnp.dot(h.astype(jnp.bfloat16), w_refs[-1][...],
                         preferred_element_type=jnp.float32)


def fcc_forward(x, weights):
    """Forward pass matching FCCNetwork.forward.

    x: (B, ...) input batch (e.g. NCHW).  weights: list of f32 arrays with
    shape (in_features, out_features)  (i.e. torch W.T, use_bias=False).
    Returns (B, num_classes) f32 logits.
    """
    B = x.shape[0]
    xf = x.reshape(B, -1).astype(jnp.float32)        # matches torch .view(B, -1)
    D = xf.shape[1]
    num_classes = weights[-1].shape[1]

    # ---- pad everything to TPU-friendly shapes (zeros, numerically inert) ----
    B_pad = max(_round_up(B, 8), 8)                  # f32 sublane minimum
    dims = [D] + [w.shape[1] for w in weights]
    dims_pad = [_round_up(d, 128) for d in dims]     # lane / MXU alignment

    xf_p = jnp.zeros((B_pad, dims_pad[0]), jnp.float32).at[:B, :D].set(xf)
    weights_p = []
    for i, w in enumerate(weights):
        wp = jnp.zeros((dims_pad[i], dims_pad[i + 1]), jnp.bfloat16)
        wp = wp.at[:dims[i], :dims[i + 1]].set(w.astype(jnp.bfloat16))
        weights_p.append(wp)

    vmem_spec = pl.BlockSpec(memory_space=pltpu.MemorySpace.VMEM)
    out_pad = pl.pallas_call(
        _fcc_kernel,
        out_shape=jax.ShapeDtypeStruct((B_pad, dims_pad[-1]), jnp.float32),
        in_specs=[vmem_spec] * (1 + len(weights_p)),
        out_specs=vmem_spec,
    )(xf_p, *weights_p)

    return out_pad[:B, :num_classes]


def init_fcc_params(key, input_shape, num_output_classes, num_hidden_units,
                    num_layers):
    """Deterministic init mirroring nn.Linear default (uniform +-1/sqrt(fan_in)).

    Returns weights transposed to (in_features, out_features), f32, unpadded.
    use_bias=False (module default), so there are no bias parameters.
    """
    d_in = 1
    for s in input_shape[1:]:
        d_in *= s
    dims = [d_in] + [num_hidden_units] * num_layers + [num_output_classes]
    weights = []
    for i in range(len(dims) - 1):
        key, sub = jax.random.split(key)
        fan_in, fan_out = dims[i], dims[i + 1]
        bound = 1.0 / (fan_in ** 0.5)
        # PyTorch stores (out, in); we create (in, out) directly (= W.T).
        w_t = jax.random.uniform(sub, (fan_in, fan_out), jnp.float32,
                                 minval=-bound, maxval=bound)
        weights.append(w_t)
    return weights


def fcc_reference_f32(x, weights):
    """Pure-JAX f32 reference (exact module semantics)."""
    h = x.reshape(x.shape[0], -1).astype(jnp.float32)
    for w in weights[:-1]:
        h = jnp.maximum(h @ w, 0.0)
    return h @ weights[-1]


def fcc_reference_bf16(x, weights):
    """Pure-JAX reference with bf16 operands / f32 accumulation (kernel math)."""
    h = x.reshape(x.shape[0], -1).astype(jnp.float32)
    for w in weights[:-1]:
        h = jnp.dot(h.astype(jnp.bfloat16), w.astype(jnp.bfloat16),
                    preferred_element_type=jnp.float32)
        h = jnp.maximum(h, 0.0)
    return jnp.dot(h.astype(jnp.bfloat16), weights[-1].astype(jnp.bfloat16),
                   preferred_element_type=jnp.float32)


if __name__ == "__main__":
    # Small shapes consistent with the module: batch=2, channels=4, spatial=16.
    input_shape = (2, 4, 16, 16)
    num_output_classes = 10
    num_hidden_units = 32
    num_layers = 2

    key = jax.random.PRNGKey(0)
    key, kx = jax.random.split(key)
    x = jax.random.normal(kx, input_shape, jnp.float32)

    weights = init_fcc_params(key, input_shape, num_output_classes,
                              num_hidden_units, num_layers)

    out = fcc_forward(x, weights)
    out = jax.block_until_ready(out)
    assert out.shape == (input_shape[0], num_output_classes), out.shape

    # Tight check against a reference using the same bf16-operand math.
    ref_bf16 = fcc_reference_bf16(x, weights)
    assert jnp.allclose(out, ref_bf16, atol=2e-3, rtol=2e-3), \
        "mismatch vs bf16-operand reference"

    # Loose check against the exact f32 module semantics (bf16 operand rounding).
    ref_f32 = fcc_reference_f32(x, weights)
    assert jnp.allclose(out, ref_f32, atol=5e-2, rtol=5e-2), \
        "mismatch vs f32 reference"

    print("KERNEL_OK")
</pallas_src>

<mosaic_0001>
module attributes {stable_mosaic.version = 11 : i64} {
  func.func @_fcc_kernel(%arg0: memref<8x1024xf32, #tpu.memory_space<vmem>>, %arg1: memref<1024x128xbf16, #tpu.memory_space<vmem>>, %arg2: memref<128x128xbf16, #tpu.memory_space<vmem>>, %arg3: memref<128x128xbf16, #tpu.memory_space<vmem>>, %arg4: memref<8x128xf32, #tpu.memory_space<vmem>>) attributes {dimension_semantics = [], scalar_prefetch = 0 : i64, scratch_operands = 0 : i64, tpu.core_type = #tpu.core_type<tc>} {
    %c0 = arith.constant 0 : index
    %c0_0 = arith.constant 0 : index
    %0 = vector.load %arg0[%c0, %c0_0] : memref<8x1024xf32, #tpu.memory_space<vmem>>, vector<8x1024xf32>
    %1 = arith.truncf %0 : vector<8x1024xf32> to vector<8x1024xbf16>
    %c0_1 = arith.constant 0 : index
    %c0_2 = arith.constant 0 : index
    %2 = vector.load %arg1[%c0_1, %c0_2] : memref<1024x128xbf16, #tpu.memory_space<vmem>>, vector<1024x128xbf16>
    %cst = arith.constant dense<0.000000e+00> : vector<8x128xf32>
    %3 = tpu.matmul %1, %2, %cst {dimension_numbers = #tpu.dot_dimension_numbers<[1], [0], [0], [1], [0, 0, 1, 1], [], []>} : vector<8x1024xbf16>, vector<1024x128xbf16>, vector<8x128xf32> -> vector<8x128xf32>
    %cst_3 = arith.constant 0.000000e+00 : f32
    %4 = vector.broadcast %cst_3 : f32 to vector<8x128xf32>
    %5 = arith.maximumf %3, %4 : vector<8x128xf32>
    %6 = arith.truncf %5 : vector<8x128xf32> to vector<8x128xbf16>
    %c0_4 = arith.constant 0 : index
    %c0_5 = arith.constant 0 : index
    %7 = vector.load %arg2[%c0_4, %c0_5] : memref<128x128xbf16, #tpu.memory_space<vmem>>, vector<128x128xbf16>
    %cst_6 = arith.constant dense<0.000000e+00> : vector<8x128xf32>
    %8 = tpu.matmul %6, %7, %cst_6 {dimension_numbers = #tpu.dot_dimension_numbers<[1], [0], [0], [1], [0, 0, 1, 1], [], []>} : vector<8x128xbf16>, vector<128x128xbf16>, vector<8x128xf32> -> vector<8x128xf32>
    %cst_7 = arith.constant 0.000000e+00 : f32
    %9 = vector.broadcast %cst_7 : f32 to vector<8x128xf32>
    %10 = arith.maximumf %8, %9 : vector<8x128xf32>
    %11 = arith.truncf %10 : vector<8x128xf32> to vector<8x128xbf16>
    %c0_8 = arith.constant 0 : index
    %c0_9 = arith.constant 0 : index
    %12 = vector.load %arg3[%c0_8, %c0_9] : memref<128x128xbf16, #tpu.memory_space<vmem>>, vector<128x128xbf16>
    %cst_10 = arith.constant dense<0.000000e+00> : vector<8x128xf32>
    %13 = tpu.matmul %11, %12, %cst_10 {dimension_numbers = #tpu.dot_dimension_numbers<[1], [0], [0], [1], [0, 0, 1, 1], [], []>} : vector<8x128xbf16>, vector<128x128xbf16>, vector<8x128xf32> -> vector<8x128xf32>
    %c0_11 = arith.constant 0 : index
    %c0_12 = arith.constant 0 : index
    %14 = vector.load %arg4[%c0_11, %c0_12] : memref<8x128xf32, #tpu.memory_space<vmem>>, vector<8x128xf32>
    tpu.vector_store %arg4[%c0_11, %c0_12], %13 {strides = array<i32>} : memref<8x128xf32, #tpu.memory_space<vmem>>, vector<8x128xf32>,
    return
  }
}

</mosaic_0001>

<llo_original>
// kernel: tpu_custom_call.1
$region0: #{tpu_custom_call.1}
  #allocation0 [shape = 'u32[]', space=smem, size = 0x4, offset = 0x4, fixed_abs, tag = 'smem constant byte address 0x4 - core index']
  #allocation1 [shape = 'u32[144,128]{1,0:T(1,128)}', space=vmem, size = 0x12000, scoped, tag = 'internal scratch']
  %s0 = inlined_call_operand.hbm [shape: f32[8,1024], index: 0, kind: input, shape index: {}]
  %s1 = inlined_call_operand.hbm [shape: bf16[1024,128], index: 1, kind: input, shape index: {}]
  %s2 = inlined_call_operand.hbm [shape: bf16[128,128], index: 2, kind: input, shape index: {}]
  %s3 = inlined_call_operand.hbm [shape: bf16[128,128], index: 3, kind: input, shape index: {}]
  %s4 = inlined_call_operand.hbm [shape: f32[8,128], index: 4, kind: output, shape index: {}]
  %s5 = sld [smem:[#allocation0]]
  $region42: #{tpu_custom_call.1} parent=0
    _
  %s7 = ssub.s32 1, %s5
  %s8 = scalar_select 0, %s7, %s5
  $region1: #{tpu_custom_call.1} parent=0
    #allocation2 [shape = 'u8[32768]{0}', space=vmem, size = 0x8000, scoped, tag = 'input window, operand 0, single buffered']
    #allocation3 [shape = 's32[1]{0}', space=sflag, size = 0x4, scoped, tag = 'scoped memory for tpu_custom_call.1']
    #allocation4 [shape = 's32[1]{0}', space=sflag, size = 0x4, scoped, tag = 'scoped memory for tpu_custom_call.1']
    #allocation5 [shape = 'u8[262144]{0}', space=vmem, size = 0x40000, scoped, tag = 'input window, operand 1, single buffered']
    #allocation6 [shape = 's32[1]{0}', space=sflag, size = 0x4, scoped, tag = 'scoped memory for tpu_custom_call.1']
    #allocation7 [shape = 'u8[32768]{0}', space=vmem, size = 0x8000, scoped, tag = 'input window, operand 2, single buffered']
    #allocation8 [shape = 'u8[32768]{0}', space=vmem, size = 0x8000, scoped, tag = 'input window, operand 3, single buffered']
    #allocation9 [shape = 's32[1]{0}', space=sflag, size = 0x4, scoped, tag = 'scoped memory for tpu_custom_call.1']
    #allocation10 [shape = 'u8[4096]{0}', space=vmem, size = 0x1000, scoped, tag = 'output window, operand 0, single buffered']
    %9 = vsyncpa [#allocation3], 0
    %10 = vsyncpa [#allocation6], 0
    %11 = vsyncpa [#allocation9], 0
    %12 = vsyncpa [#allocation4], 0
    // Predicated region
    $region2: #{tpu_custom_call.1} parent=1 // pred_check
      _
    $region3: #{tpu_custom_call.1} parent=1 // pred_check_branch
      %14 = sbr.rel (0) target = $region5
    $region4: #{tpu_custom_call.1} parent=1 // pred_region
      %s16 = ssub.s32 1024, 1024
      %17 = vsyncadd [#allocation3], %s16
      %s19 = sshll.u32 [#allocation2], 4
      %s20 = int_to_ptr.vmem [resolvable:$true] %s19
      %22 = dma.hbm_to_vmem [thread:$0]  %s0, 1024, %s20, [#allocation3]
    $region5: #{tpu_custom_call.1} parent=1 // pred_fallthru
      _
    // Predicated region
    $region6: #{tpu_custom_call.1} parent=1 // pred_check
      _
    $region7: #{tpu_custom_call.1} parent=1 // pred_check_branch
      %24 = sbr.rel (0) target = $region9
    $region8: #{tpu_custom_call.1} parent=1 // pred_region
      %s26 = ssub.s32 8192, 8192
      %27 = vsyncadd [#allocation6], %s26
      %s28 = sshll.u32 [#allocation5], 4
      %s29 = int_to_ptr.vmem [resolvable:$true] %s28
      %34 = dma.hbm_to_vmem [thread:$0]  %s1, 8192, %s29, [#allocation6], 64, 64, 4
    $region9: #{tpu_custom_call.1} parent=1 // pred_fallthru
      _
    // Predicated region
    $region10: #{tpu_custom_call.1} parent=1 // pred_check
      _
    $region11: #{tpu_custom_call.1} parent=1 // pred_check_branch
      %36 = sbr.rel (0) target = $region13
    $region12: #{tpu_custom_call.1} parent=1 // pred_region
      %s38 = ssub.s32 1024, 1024
      %39 = vsyncadd [#allocation6], %s38
      %s40 = sshll.u32 [#allocation7], 4
      %s41 = int_to_ptr.vmem [resolvable:$true] %s40
      %46 = dma.hbm_to_vmem [thread:$0]  %s2, 1024, %s41, [#allocation6], 64, 64, 4
    $region13: #{tpu_custom_call.1} parent=1 // pred_fallthru
      _
    // Predicated region
    $region14: #{tpu_custom_call.1} parent=1 // pred_check
      _
    $region15: #{tpu_custom_call.1} parent=1 // pred_check_branch
      %48 = sbr.rel (0) target = $region17
    $region16: #{tpu_custom_call.1} parent=1 // pred_region
      %s50 = ssub.s32 1024, 1024
      %51 = vsyncadd [#allocation9], %s50
      %s52 = sshll.u32 [#allocation8], 4
      %s53 = int_to_ptr.vmem [resolvable:$true] %s52
      %58 = dma.hbm_to_vmem [thread:$0]  %s3, 1024, %s53, [#allocation9], 64, 64, 4
    $region17: #{tpu_custom_call.1} parent=1 // pred_fallthru
      _
    // Predicated region
    $region18: #{tpu_custom_call.1} parent=1 // pred_check
      _
    $region19: #{tpu_custom_call.1} parent=1 // pred_check_branch
      %60 = sbr.rel (0) target = $region21
    $region20: #{tpu_custom_call.1} parent=1 // pred_region
      %61 = dma.done [#allocation3], 1024
    $region21: #{tpu_custom_call.1} parent=1 // pred_fallthru
      _
    // Predicated region
    $region22: #{tpu_custom_call.1} parent=1 // pred_check
      _
    $region23: #{tpu_custom_call.1} parent=1 // pred_check_branch
      %63 = sbr.rel (0) target = $region25
    $region24: #{tpu_custom_call.1} parent=1 // pred_region
      %64 = dma.done [#allocation6], 8192
    $region25: #{tpu_custom_call.1} parent=1 // pred_fallthru
      _
    // Predicated region
    $region26: #{tpu_custom_call.1} parent=1 // pred_check
      _
    $region27: #{tpu_custom_call.1} parent=1 // pred_check_branch
      %66 = sbr.rel (0) target = $region29
    $region28: #{tpu_custom_call.1} parent=1 // pred_region
      %67 = dma.done [#allocation6], 1024
    $region29: #{tpu_custom_call.1} parent=1 // pred_fallthru
      _
    // Predicated region
    $region30: #{tpu_custom_call.1} parent=1 // pred_check
      _
    $region31: #{tpu_custom_call.1} parent=1 // pred_check_branch
      %69 = sbr.rel (0) target = $region33
    $region32: #{tpu_custom_call.1} parent=1 // pred_region
      %70 = dma.done [#allocation9], 1024
    $region33: #{tpu_custom_call.1} parent=1 // pred_fallthru
      _
    %v72 = vld [vmem:[#allocation2] sm:$0xff]
    %v73 = vld [vmem:[#allocation2 + $0x8] sm:$0xff]
    %v74 = vld [vmem:[#allocation2 + $0x10] sm:$0xff]
    %v75 = vld [vmem:[#allocation2 + $0x18] sm:$0xff]
    %v76 = vld [vmem:[#allocation2 + $0x20] sm:$0xff]
    %v77 = vld [vmem:[#allocation2 + $0x28] sm:$0xff]
    %v78 = vld [vmem:[#allocation2 + $0x30] sm:$0xff]
    %v79 = vld [vmem:[#allocation2 + $0x38] sm:$0xff]
    %v80 = vpack.c.bf16 %v72, %v72
    %v81 = vpack.c.bf16 %v73, %v73
    %v82 = vpack.c.bf16 %v74, %v74
    %v83 = vpack.c.bf16 %v75, %v75
    %v84 = vpack.c.bf16 %v76, %v76
    %v85 = vpack.c.bf16 %v77, %v77
    %v86 = vpack.c.bf16 %v78, %v78
    %v87 = vpack.c.bf16 %v79, %v79
    %v88 = vld [vmem:[#allocation5] sm:$0xf]
    %v89 = vld [vmem:[#allocation5 + $0x4] sm:$0xf]
    %v90 = vld [vmem:[#allocation5 + $0x8] sm:$0xf]
    %v91 = vld [vmem:[#allocation5 + $0xc] sm:$0xf]
    %v92 = vld [vmem:[#allocation5 + $0x10] sm:$0xf]
    %v93 = vld [vmem:[#allocation5 + $0x14] sm:$0xf]
    %v94 = vld [vmem:[#allocation5 + $0x18] sm:$0xf]
    %v95 = vld [vmem:[#allocation5 + $0x1c] sm:$0xf]
    %v96 = vld [vmem:[#allocation5 + $0x20] sm:$0xf]
    %v97 = vld [vmem:[#allocation5 + $0x24] sm:$0xf]
    %v98 = vld [vmem:[#allocation5 + $0x28] sm:$0xf]
    %v99 = vld [vmem:[#allocation5 + $0x2c] sm:$0xf]
    %v100 = vld [vmem:[#allocation5 + $0x30] sm:$0xf]
    %v101 = vld [vmem:[#allocation5 + $0x34] sm:$0xf]
    %v102 = vld [vmem:[#allocation5 + $0x38] sm:$0xf]
    %v103 = vld [vmem:[#allocation5 + $0x3c] sm:$0xf]
    %v104 = vld [vmem:[#allocation5 + $0x40] sm:$0xf]
    %v105 = vld [vmem:[#allocation5 + $0x44] sm:$0xf]
    %v106 = vld [vmem:[#allocation5 + $0x48] sm:$0xf]
    %v107 = vld [vmem:[#allocation5 + $0x4c] sm:$0xf]
    %v108 = vld [vmem:[#allocation5 + $0x50] sm:$0xf]
    %v109 = vld [vmem:[#allocation5 + $0x54] sm:$0xf]
    %v110 = vld [vmem:[#allocation5 + $0x58] sm:$0xf]
    %v111 = vld [vmem:[#allocation5 + $0x5c] sm:$0xf]
    %v112 = vld [vmem:[#allocation5 + $0x60] sm:$0xf]
    %v113 = vld [vmem:[#allocation5 + $0x64] sm:$0xf]
    %v114 = vld [vmem:[#allocation5 + $0x68] sm:$0xf]
    %v115 = vld [vmem:[#allocation5 + $0x6c] sm:$0xf]
    %v116 = vld [vmem:[#allocation5 + $0x70] sm:$0xf]
    %v117 = vld [vmem:[#allocation5 + $0x74] sm:$0xf]
    %v118 = vld [vmem:[#allocation5 + $0x78] sm:$0xf]
    %v119 = vld [vmem:[#allocation5 + $0x7c] sm:$0xf]
    %v120 = vld [vmem:[#allocation5 + $0x80] sm:$0xf]
    %v121 = vld [vmem:[#allocation5 + $0x84] sm:$0xf]
    %v122 = vld [vmem:[#allocation5 + $0x88] sm:$0xf]
    %v123 = vld [vmem:[#allocation5 + $0x8c] sm:$0xf]
    %v124 = vld [vmem:[#allocation5 + $0x90] sm:$0xf]
    %v125 = vld [vmem:[#allocation5 + $0x94] sm:$0xf]
    %v126 = vld [vmem:[#allocation5 + $0x98] sm:$0xf]
    %v127 = vld [vmem:[#allocation5 + $0x9c] sm:$0xf]
    %v128 = vld [vmem:[#allocation5 + $0xa0] sm:$0xf]
    %v129 = vld [vmem:[#allocation5 + $0xa4] sm:$0xf]
    %v130 = vld [vmem:[#allocation5 + $0xa8] sm:$0xf]
    %v131 = vld [vmem:[#allocation5 + $0xac] sm:$0xf]
    %v132 = vld [vmem:[#allocation5 + $0xb0] sm:$0xf]
    %v133 = vld [vmem:[#allocation5 + $0xb4] sm:$0xf]
    %v134 = vld [vmem:[#allocation5 + $0xb8] sm:$0xf]
    %v135 = vld [vmem:[#allocation5 + $0xbc] sm:$0xf]
    %v136 = vld [vmem:[#allocation5 + $0xc0] sm:$0xf]
    %v137 = vld [vmem:[#allocation5 + $0xc4] sm:$0xf]
    %v138 = vld [vmem:[#allocation5 + $0xc8] sm:$0xf]
    %v139 = vld [vmem:[#allocation5 + $0xcc] sm:$0xf]
    %v140 = vld [vmem:[#allocation5 + $0xd0] sm:$0xf]
    %v141 = vld [vmem:[#allocation5 + $0xd4] sm:$0xf]
    %v142 = vld [vmem:[#allocation5 + $0xd8] sm:$0xf]
    %v143 = vld [vmem:[#allocation5 + $0xdc] sm:$0xf]
    %v144 = vld [vmem:[#allocation5 + $0xe0] sm:$0xf]
    %v145 = vld [vmem:[#allocation5 + $0xe4] sm:$0xf]
    %v146 = vld [vmem:[#allocation5 + $0xe8] sm:$0xf]
    %v147 = vld [vmem:[#allocation5 + $0xec] sm:$0xf]
    %v148 = vld [vmem:[#allocation5 + $0xf0] sm:$0xf]
    %v149 = vld [vmem:[#allocation5 + $0xf4] sm:$0xf]
    %v150 = vld [vmem:[#allocation5 + $0xf8] sm:$0xf]
    %v151 = vld [vmem:[#allocation5 + $0xfc] sm:$0xf]
    %v152 = vld [vmem:[#allocation5 + $0x100] sm:$0xf]
    %v153 = vld [vmem:[#allocation5 + $0x104] sm:$0xf]
    %v154 = vld [vmem:[#allocation5 + $0x108] sm:$0xf]
    %v155 = vld [vmem:[#allocation5 + $0x10c] sm:$0xf]
    %v156 = vld [vmem:[#allocation5 + $0x110] sm:$0xf]
    %v157 = vld [vmem:[#allocation5 + $0x114] sm:$0xf]
    %v158 = vld [vmem:[#allocation5 + $0x118] sm:$0xf]
    %v159 = vld [vmem:[#allocation5 + $0x11c] sm:$0xf]
    %v160 = vld [vmem:[#allocation5 + $0x120] sm:$0xf]
    %v161 = vld [vmem:[#allocation5 + $0x124] sm:$0xf]
    %v162 = vld [vmem:[#allocation5 + $0x128] sm:$0xf]
    %v163 = vld [vmem:[#allocation5 + $0x12c] sm:$0xf]
    %v164 = vld [vmem:[#allocation5 + $0x130] sm:$0xf]
    %v165 = vld [vmem:[#allocation5 + $0x134] sm:$0xf]
    %v166 = vld [vmem:[#allocation5 + $0x138] sm:$0xf]
    %v167 = vld [vmem:[#allocation5 + $0x13c] sm:$0xf]
    %v168 = vld [vmem:[#allocation5 + $0x140] sm:$0xf]
    %v169 = vld [vmem:[#allocation5 + $0x144] sm:$0xf]
    %v170 = vld [vmem:[#allocation5 + $0x148] sm:$0xf]
    %v171 = vld [vmem:[#allocation5 + $0x14c] sm:$0xf]
    %v172 = vld [vmem:[#allocation5 + $0x150] sm:$0xf]
    %v173 = vld [vmem:[#allocation5 + $0x154] sm:$0xf]
    %v174 = vld [vmem:[#allocation5 + $0x158] sm:$0xf]
    %v175 = vld [vmem:[#allocation5 + $0x15c] sm:$0xf]
    %v176 = vld [vmem:[#allocation5 + $0x160] sm:$0xf]
    %v177 = vld [vmem:[#allocation5 + $0x164] sm:$0xf]
    %v178 = vld [vmem:[#allocation5 + $0x168] sm:$0xf]
    %v179 = vld [vmem:[#allocation5 + $0x16c] sm:$0xf]
    %v180 = vld [vmem:[#allocation5 + $0x170] sm:$0xf]
    %v181 = vld [vmem:[#allocation5 + $0x174] sm:$0xf]
    %v182 = vld [vmem:[#allocation5 + $0x178] sm:$0xf]
    %v183 = vld [vmem:[#allocation5 + $0x17c] sm:$0xf]
    %v184 = vld [vmem:[#allocation5 + $0x180] sm:$0xf]
    %v185 = vld [vmem:[#allocation5 + $0x184] sm:$0xf]
    %v186 = vld [vmem:[#allocation5 + $0x188] sm:$0xf]
    %v187 = vld [vmem:[#allocation5 + $0x18c] sm:$0xf]
    %v188 = vld [vmem:[#allocation5 + $0x190] sm:$0xf]
    %v189 = vld [vmem:[#allocation5 + $0x194] sm:$0xf]
    %v190 = vld [vmem:[#allocation5 + $0x198] sm:$0xf]
    %v191 = vld [vmem:[#allocation5 + $0x19c] sm:$0xf]
    %v192 = vld [vmem:[#allocation5 + $0x1a0] sm:$0xf]
    %v193 = vld [vmem:[#allocation5 + $0x1a4] sm:$0xf]
    %v194 = vld [vmem:[#allocation5 + $0x1a8] sm:$0xf]
    %v195 = vld [vmem:[#allocation5 + $0x1ac] sm:$0xf]
    %v196 = vld [vmem:[#allocation5 + $0x1b0] sm:$0xf]
    %v197 = vld [vmem:[#allocation5 + $0x1b4] sm:$0xf]
    %v198 = vld [vmem:[#allocation5 + $0x1b8] sm:$0xf]
    %v199 = vld [vmem:[#allocation5 + $0x1bc] sm:$0xf]
    %v200 = vld [vmem:[#allocation5 + $0x1c0] sm:$0xf]
    %v201 = vld [vmem:[#allocation5 + $0x1c4] sm:$0xf]
    %v202 = vld [vmem:[#allocation5 + $0x1c8] sm:$0xf]
    %v203 = vld [vmem:[#allocation5 + $0x1cc] sm:$0xf]
    %v204 = vld [vmem:[#allocation5 + $0x1d0] sm:$0xf]
    %v205 = vld [vmem:[#allocation5 + $0x1d4] sm:$0xf]
    %v206 = vld [vmem:[#allocation5 + $0x1d8] sm:$0xf]
    %v207 = vld [vmem:[#allocation5 + $0x1dc] sm:$0xf]
    %v208 = vld [vmem:[#allocation5 + $0x1e0] sm:$0xf]
    %v209 = vld [vmem:[#allocation5 + $0x1e4] sm:$0xf]
    %v210 = vld [vmem:[#allocation5 + $0x1e8] sm:$0xf]
    %v211 = vld [vmem:[#allocation5 + $0x1ec] sm:$0xf]
    %v212 = vld [vmem:[#allocation5 + $0x1f0] sm:$0xf]
    %v213 = vld [vmem:[#allocation5 + $0x1f4] sm:$0xf]
    %v214 = vld [vmem:[#allocation5 + $0x1f8] sm:$0xf]
    %v215 = vld [vmem:[#allocation5 + $0x1fc] sm:$0xf]
    %v344 = vunpack.c.l.b16 %v88
    %v345 = vunpack.c.l.b16 %v89
    %v346 = vunpack.c.l.b16 %v90
    %v347 = vunpack.c.l.b16 %v91
    %v348 = vunpack.c.l.b16 %v92
    %v349 = vunpack.c.l.b16 %v93
    %v350 = vunpack.c.l.b16 %v94
    %v351 = vunpack.c.l.b16 %v95
    %v352 = vunpack.c.l.b16 %v96
    %v353 = vunpack.c.l.b16 %v97
    %v354 = vunpack.c.l.b16 %v98
    %v355 = vunpack.c.l.b16 %v99
    %v356 = vunpack.c.l.b16 %v100
    %v357 = vunpack.c.l.b16 %v101
    %v358 = vunpack.c.l.b16 %v102
    %v359 = vunpack.c.l.b16 %v103
    %v360 = vunpack.c.l.b16 %v104
    %v361 = vunpack.c.l.b16 %v105
    %v362 = vunpack.c.l.b16 %v106
    %v363 = vunpack.c.l.b16 %v107
    %v364 = vunpack.c.l.b16 %v108
    %v365 = vunpack.c.l.b16 %v109
    %v366 = vunpack.c.l.b16 %v110
    %v367 = vunpack.c.l.b16 %v111
    %v368 = vunpack.c.l.b16 %v112
    %v369 = vunpack.c.l.b16 %v113
    %v370 = vunpack.c.l.b16 %v114
    %v371 = vunpack.c.l.b16 %v115
    %v372 = vunpack.c.l.b16 %v116
    %v373 = vunpack.c.l.b16 %v117
    %v374 = vunpack.c.l.b16 %v118
    %v375 = vunpack.c.l.b16 %v119
    %v376 = vunpack.c.l.b16 %v120
    %v377 = vunpack.c.l.b16 %v121
    %v378 = vunpack.c.l.b16 %v122
    %v379 = vunpack.c.l.b16 %v123
    %v380 = vunpack.c.l.b16 %v124
    %v381 = vunpack.c.l.b16 %v125
    %v382 = vunpack.c.l.b16 %v126
    %v383 = vunpack.c.l.b16 %v127
    %v384 = vunpack.c.l.b16 %v128
    %v385 = vunpack.c.l.b16 %v129
    %v386 = vunpack.c.l.b16 %v130
    %v387 = vunpack.c.l.b16 %v131
    %v388 = vunpack.c.l.b16 %v132
    %v389 = vunpack.c.l.b16 %v133
    %v390 = vunpack.c.l.b16 %v134
    %v391 = vunpack.c.l.b16 %v135
    %v392 = vunpack.c.l.b16 %v136
    %v393 = vunpack.c.l.b16 %v137
    %v394 = vunpack.c.l.b16 %v138
    %v395 = vunpack.c.l.b16 %v139
    %v396 = vunpack.c.l.b16 %v140
    %v397 = vunpack.c.l.b16 %v141
    %v398 = vunpack.c.l.b16 %v142
    %v399 = vunpack.c.l.b16 %v143
    %v400 = vunpack.c.l.b16 %v144
    %v401 = vunpack.c.l.b16 %v145
    %v402 = vunpack.c.l.b16 %v146
    %v403 = vunpack.c.l.b16 %v147
    %v404 = vunpack.c.l.b16 %v148
    %v405 = vunpack.c.l.b16 %v149
    %v406 = vunpack.c.l.b16 %v150
    %v407 = vunpack.c.l.b16 %v151
    %v408 = vunpack.c.l.b16 %v152
    %v409 = vunpack.c.l.b16 %v153
    %v410 = vunpack.c.l.b16 %v154
    %v411 = vunpack.c.l.b16 %v155
    %v412 = vunpack.c.l.b16 %v156
    %v413 = vunpack.c.l.b16 %v157
    %v414 = vunpack.c.l.b16 %v158
    %v415 = vunpack.c.l.b16 %v159
    %v416 = vunpack.c.l.b16 %v160
    %v417 = vunpack.c.l.b16 %v161
    %v418 = vunpack.c.l.b16 %v162
    %v419 = vunpack.c.l.b16 %v163
    %v420 = vunpack.c.l.b16 %v164
    %v421 = vunpack.c.l.b16 %v165
    %v422 = vunpack.c.l.b16 %v166
    %v423 = vunpack.c.l.b16 %v167
    %v424 = vunpack.c.l.b16 %v168
    %v425 = vunpack.c.l.b16 %v169
    %v426 = vunpack.c.l.b16 %v170
    %v427 = vunpack.c.l.b16 %v171
    %v428 = vunpack.c.l.b16 %v172
    %v429 = vunpack.c.l.b16 %v173
    %v430 = vunpack.c.l.b16 %v174
    %v431 = vunpack.c.l.b16 %v175
    %v432 = vunpack.c.l.b16 %v176
    %v433 = vunpack.c.l.b16 %v177
    %v434 = vunpack.c.l.b16 %v178
    %v435 = vunpack.c.l.b16 %v179
    %v436 = vunpack.c.l.b16 %v180
    %v437 = vunpack.c.l.b16 %v181
    %v438 = vunpack.c.l.b16 %v182
    %v439 = vunpack.c.l.b16 %v183
    %v440 = vunpack.c.l.b16 %v184
    %v441 = vunpack.c.l.b16 %v185
    %v442 = vunpack.c.l.b16 %v186
    %v443 = vunpack.c.l.b16 %v187
    %v444 = vunpack.c.l.b16 %v188
    %v445 = vunpack.c.l.b16 %v189
    %v446 = vunpack.c.l.b16 %v190
    %v447 = vunpack.c.l.b16 %v191
    %v448 = vunpack.c.l.b16 %v192
    %v449 = vunpack.c.l.b16 %v193
    %v450 = vunpack.c.l.b16 %v194
    %v451 = vunpack.c.l.b16 %v195
    %v452 = vunpack.c.l.b16 %v196
    %v453 = vunpack.c.l.b16 %v197
    %v454 = vunpack.c.l.b16 %v198
    %v455 = vunpack.c.l.b16 %v199
    %v456 = vunpack.c.l.b16 %v200
    %v457 = vunpack.c.l.b16 %v201
    %v458 = vunpack.c.l.b16 %v202
    %v459 = vunpack.c.l.b16 %v203
    %v460 = vunpack.c.l.b16 %v204
    %v461 = vunpack.c.l.b16 %v205
    %v462 = vunpack.c.l.b16 %v206
    %v463 = vunpack.c.l.b16 %v207
    %v464 = vunpack.c.l.b16 %v208
    %v465 = vunpack.c.l.b16 %v209
    %v466 = vunpack.c.l.b16 %v210
    %v467 = vunpack.c.l.b16 %v211
    %v468 = vunpack.c.l.b16 %v212
    %v469 = vunpack.c.l.b16 %v213
    %v470 = vunpack.c.l.b16 %v214
    %v471 = vunpack.c.l.b16 %v215
    %v472 = vpack.c.b16 %v345, %v344
    %v473 = vpack.c.b16 %v347, %v346
    %v474 = vpack.c.b16 %v349, %v348
    %v475 = vpack.c.b16 %v351, %v350
    %v476 = vpack.c.b16 %v353, %v352
    %v477 = vpack.c.b16 %v355, %v354
    %v478 = vpack.c.b16 %v357, %v356
    %v479 = vpack.c.b16 %v359, %v358
    %v480 = vpack.c.b16 %v361, %v360
    %v481 = vpack.c.b16 %v363, %v362
    %v482 = vpack.c.b16 %v365, %v364
    %v483 = vpack.c.b16 %v367, %v366
    %v484 = vpack.c.b16 %v369, %v368
    %v485 = vpack.c.b16 %v371, %v370
    %v486 = vpack.c.b16 %v373, %v372
    %v487 = vpack.c.b16 %v375, %v374
    %v488 = vpack.c.b16 %v377, %v376
    %v489 = vpack.c.b16 %v379, %v378
    %v490 = vpack.c.b16 %v381, %v380
    %v491 = vpack.c.b16 %v383, %v382
    %v492 = vpack.c.b16 %v385, %v384
    %v493 = vpack.c.b16 %v387, %v386
    %v494 = vpack.c.b16 %v389, %v388
    %v495 = vpack.c.b16 %v391, %v390
    %v496 = vpack.c.b16 %v393, %v392
    %v497 = vpack.c.b16 %v395, %v394
    %v498 = vpack.c.b16 %v397, %v396
    %v499 = vpack.c.b16 %v399, %v398
    %v500 = vpack.c.b16 %v401, %v400
    %v501 = vpack.c.b16 %v403, %v402
    %v502 = vpack.c.b16 %v405, %v404
    %v503 = vpack.c.b16 %v407, %v406
    %v504 = vpack.c.b16 %v409, %v408
    %v505 = vpack.c.b16 %v411, %v410
    %v506 = vpack.c.b16 %v413, %v412
    %v507 = vpack.c.b16 %v415, %v414
    %v508 = vpack.c.b16 %v417, %v416
    %v509 = vpack.c.b16 %v419, %v418
    %v510 = vpack.c.b16 %v421, %v420
    %v511 = vpack.c.b16 %v423, %v422
    %v512 = vpack.c.b16 %v425, %v424
    %v513 = vpack.c.b16 %v427, %v426
    %v514 = vpack.c.b16 %v429, %v428
    %v515 = vpack.c.b16 %v431, %v430
    %v516 = vpack.c.b16 %v433, %v432
    %v517 = vpack.c.b16 %v435, %v434
    %v518 = vpack.c.b16 %v437, %v436
    %v519 = vpack.c.b16 %v439, %v438
    %v520 = vpack.c.b16 %v441, %v440
    %v521 = vpack.c.b16 %v443, %v442
    %v522 = vpack.c.b16 %v445, %v444
    %v523 = vpack.c.b16 %v447, %v446
    %v524 = vpack.c.b16 %v449, %v448
    %v525 = vpack.c.b16 %v451, %v450
    %v526 = vpack.c.b16 %v453, %v452
    %v527 = vpack.c.b16 %v455, %v454
    %v528 = vpack.c.b16 %v457, %v456
    %v529 = vpack.c.b16 %v459, %v458
    %v530 = vpack.c.b16 %v461, %v460
    %v531 = vpack.c.b16 %v463, %v462
    %v532 = vpack.c.b16 %v465, %v464
    %v533 = vpack.c.b16 %v467, %v466
    %v534 = vpack.c.b16 %v469, %v468
    %v535 = vpack.c.b16 %v471, %v470
    %600 = vmatprep.subr.bf16.mxu0 0
    %601 = vmatpush1.bf16.msra.mxu0 %v479
    %602 = vmatprep.subr.bf16.mxu0 0
    %603 = vmatpush1.bf16.msra.mxu0 %v478
    %604 = vmatprep.subr.bf16.mxu0 0
    %605 = vmatpush1.bf16.msra.mxu0 %v477
    %606 = vmatprep.subr.bf16.mxu0 0
    %607 = vmatpush1.bf16.msra.mxu0 %v476
    %608 = vmatprep.subr.bf16.mxu0 0
    %609 = vmatpush1.bf16.msra.mxu0 %v475
    %610 = vmatprep.subr.bf16.mxu0 0
    %611 = vmatpush1.bf16.msra.mxu0 %v474
    %612 = vmatprep.subr.bf16.mxu0 0
    %613 = vmatpush1.bf16.msra.mxu0 %v473
    %614 = vmatprep.subr.bf16.mxu0 0
    %615 = vmatpush1.bf16.msra.mxu0 %v472
    %616 = vmatprep.subr.bf16.mxu0 0
    %617 = vmatpush2.bf16.msra.mxu0 %v487
    %618 = vmatprep.subr.bf16.mxu0 0
    %619 = vmatpush2.bf16.msra.mxu0 %v486
    %620 = vmatprep.subr.bf16.mxu0 0
    %621 = vmatpush2.bf16.msra.mxu0 %v485
    %622 = vmatprep.subr.bf16.mxu0 0
    %623 = vmatpush2.bf16.msra.mxu0 %v484
    %624 = vmatprep.subr.bf16.mxu0 0
    %625 = vmatpush2.bf16.msra.mxu0 %v483
    %626 = vmatprep.subr.bf16.mxu0 0
    %627 = vmatpush2.bf16.msra.mxu0 %v482
    %628 = vmatprep.subr.bf16.mxu0 0
    %629 = vmatpush2.bf16.msra.mxu0 %v481
    %630 = vmatprep.subr.bf16.mxu0 0
    %631 = vmatpush2.bf16.msra.mxu0 %v480
    %632 = vmatprep.mubr.bf16.mxu0 %v81
    %633 = vmatmul.mubr.bf16.gmra.mxu0 %v80
    %v634 = vpop.f32.mrf.mxu0
    %v635 = vadd.f32 0.0, %v634
    %v636 = vpop.f32.mrf.mxu0
    %v637 = vpop.f32.mrf.mxu0
    %v638 = vpop.f32.mrf.mxu0
    %639 = vdwg.mxu0
    %640 = vmatprep.subr.bf16.mxu0 0
    %641 = vmatpush1.bf16.msra.mxu0 %v495
    %642 = vmatprep.subr.bf16.mxu0 0
    %643 = vmatpush1.bf16.msra.mxu0 %v494
    %644 = vmatprep.subr.bf16.mxu0 0
    %645 = vmatpush1.bf16.msra.mxu0 %v493
    %646 = vmatprep.subr.bf16.mxu0 0
    %647 = vmatpush1.bf16.msra.mxu0 %v492
    %648 = vmatprep.subr.bf16.mxu0 0
    %649 = vmatpush1.bf16.msra.mxu0 %v491
    %650 = vmatprep.subr.bf16.mxu0 0
    %651 = vmatpush1.bf16.msra.mxu0 %v490
    %652 = vmatprep.subr.bf16.mxu0 0
    %653 = vmatpush1.bf16.msra.mxu0 %v489
    %654 = vmatprep.subr.bf16.mxu0 0
    %655 = vmatpush1.bf16.msra.mxu0 %v488
    %656 = vmatprep.subr.bf16.mxu0 0
    %657 = vmatpush2.bf16.msra.mxu0 %v503
    %658 = vmatprep.subr.bf16.mxu0 0
    %659 = vmatpush2.bf16.msra.mxu0 %v502
    %660 = vmatprep.subr.bf16.mxu0 0
    %661 = vmatpush2.bf16.msra.mxu0 %v501
    %662 = vmatprep.subr.bf16.mxu0 0
    %663 = vmatpush2.bf16.msra.mxu0 %v500
    %664 = vmatprep.subr.bf16.mxu0 0
    %665 = vmatpush2.bf16.msra.mxu0 %v499
    %666 = vmatprep.subr.bf16.mxu0 0
    %667 = vmatpush2.bf16.msra.mxu0 %v498
    %668 = vmatprep.subr.bf16.mxu0 0
    %669 = vmatpush2.bf16.msra.mxu0 %v497
    %670 = vmatprep.subr.bf16.mxu0 0
    %671 = vmatpush2.bf16.msra.mxu0 %v496
    %672 = vmatprep.mubr.bf16.mxu0 %v83
    %673 = vmatmul.mubr.bf16.gmra.mxu0 %v82
    %v674 = vpop.f32.mrf.mxu0
    %v675 = vadd.f32 %v635, %v674
    %v676 = vpop.f32.mrf.mxu0
    %v677 = vpop.f32.mrf.mxu0
    %v678 = vpop.f32.mrf.mxu0
    %679 = vdwg.mxu0
    %680 = vmatprep.subr.bf16.mxu0 0
    %681 = vmatpush1.bf16.msra.mxu0 %v511
    %682 = vmatprep.subr.bf16.mxu0 0
    %683 = vmatpush1.bf16.msra.mxu0 %v510
    %684 = vmatprep.subr.bf16.mxu0 0
    %685 = vmatpush1.bf16.msra.mxu0 %v509
    %686 = vmatprep.subr.bf16.mxu0 0
    %687 = vmatpush1.bf16.msra.mxu0 %v508
    %688 = vmatprep.subr.bf16.mxu0 0
    %689 = vmatpush1.bf16.msra.mxu0 %v507
    %690 = vmatprep.subr.bf16.mxu0 0
    %691 = vmatpush1.bf16.msra.mxu0 %v506
    %692 = vmatprep.subr.bf16.mxu0 0
    %693 = vmatpush1.bf16.msra.mxu0 %v505
    %694 = vmatprep.subr.bf16.mxu0 0
    %695 = vmatpush1.bf16.msra.mxu0 %v504
    %696 = vmatprep.subr.bf16.mxu0 0
    %697 = vmatpush2.bf16.msra.mxu0 %v519
    %698 = vmatprep.subr.bf16.mxu0 0
    %699 = vmatpush2.bf16.msra.mxu0 %v518
    %700 = vmatprep.subr.bf16.mxu0 0
    %701 = vmatpush2.bf16.msra.mxu0 %v517
    %702 = vmatprep.subr.bf16.mxu0 0
    %703 = vmatpush2.bf16.msra.mxu0 %v516
    %704 = vmatprep.subr.bf16.mxu0 0
    %705 = vmatpush2.bf16.msra.mxu0 %v515
    %706 = vmatprep.subr.bf16.mxu0 0
    %707 = vmatpush2.bf16.msra.mxu0 %v514
    %708 = vmatprep.subr.bf16.mxu0 0
    %709 = vmatpush2.bf16.msra.mxu0 %v513
    %710 = vmatprep.subr.bf16.mxu0 0
    %711 = vmatpush2.bf16.msra.mxu0 %v512
    %712 = vmatprep.mubr.bf16.mxu0 %v85
    %713 = vmatmul.mubr.bf16.gmra.mxu0 %v84
    %v714 = vpop.f32.mrf.mxu0
    %v715 = vadd.f32 %v675, %v714
    %v716 = vpop.f32.mrf.mxu0
    %v717 = vpop.f32.mrf.mxu0
    %v718 = vpop.f32.mrf.mxu0
    %719 = vdwg.mxu0
    %720 = vmatprep.subr.bf16.mxu0 0
    %721 = vmatpush1.bf16.msra.mxu0 %v527
    %722 = vmatprep.subr.bf16.mxu0 0
    %723 = vmatpush1.bf16.msra.mxu0 %v526
    %724 = vmatprep.subr.bf16.mxu0 0
    %725 = vmatpush1.bf16.msra.mxu0 %v525
    %726 = vmatprep.subr.bf16.mxu0 0
    %727 = vmatpush1.bf16.msra.mxu0 %v524
    %728 = vmatprep.subr.bf16.mxu0 0
    %729 = vmatpush1.bf16.msra.mxu0 %v523
    %730 = vmatprep.subr.bf16.mxu0 0
    %731 = vmatpush1.bf16.msra.mxu0 %v522
    %732 = vmatprep.subr.bf16.mxu0 0
    %733 = vmatpush1.bf16.msra.mxu0 %v521
    %734 = vmatprep.subr.bf16.mxu0 0
    %735 = vmatpush1.bf16.msra.mxu0 %v520
    %736 = vmatprep.subr.bf16.mxu0 0
    %737 = vmatpush2.bf16.msra.mxu0 %v535
    %738 = vmatprep.subr.bf16.mxu0 0
    %739 = vmatpush2.bf16.msra.mxu0 %v534
    %740 = vmatprep.subr.bf16.mxu0 0
    %741 = vmatpush2.bf16.msra.mxu0 %v533
    %742 = vmatprep.subr.bf16.mxu0 0
    %743 = vmatpush2.bf16.msra.mxu0 %v532
    %744 = vmatprep.subr.bf16.mxu0 0
    %745 = vmatpush2.bf16.msra.mxu0 %v531
    %746 = vmatprep.subr.bf16.mxu0 0
    %747 = vmatpush2.bf16.msra.mxu0 %v530
    %748 = vmatprep.subr.bf16.mxu0 0
    %749 = vmatpush2.bf16.msra.mxu0 %v529
    %750 = vmatprep.subr.bf16.mxu0 0
    %751 = vmatpush2.bf16.msra.mxu0 %v528
    %752 = vmatprep.mubr.bf16.mxu0 %v87
    %753 = vmatmul.mubr.bf16.gmra.mxu0 %v86
    %v754 = vpop.f32.mrf.mxu0
    %v755 = vadd.f32 %v715, %v754
    %v756 = vpop.f32.mrf.mxu0
    %v757 = vpop.f32.mrf.mxu0
    %v758 = vpop.f32.mrf.mxu0
    %759 = vdwg.mxu0
    %v760 = vmax.f32 %v755, 0.0
    %v761 = vpack.c.bf16 %v760, %v760
    %v762 = vld [vmem:[#allocation7] sm:$0xf]
    %v763 = vld [vmem:[#allocation7 + $0x4] sm:$0xf]
    %v764 = vld [vmem:[#allocation7 + $0x8] sm:$0xf]
    %v765 = vld [vmem:[#allocation7 + $0xc] sm:$0xf]
    %v766 = vld [vmem:[#allocation7 + $0x10] sm:$0xf]
    %v767 = vld [vmem:[#allocation7 + $0x14] sm:$0xf]
    %v768 = vld [vmem:[#allocation7 + $0x18] sm:$0xf]
    %v769 = vld [vmem:[#allocation7 + $0x1c] sm:$0xf]
    %v770 = vld [vmem:[#allocation7 + $0x20] sm:$0xf]
    %v771 = vld [vmem:[#allocation7 + $0x24] sm:$0xf]
    %v772 = vld [vmem:[#allocation7 + $0x28] sm:$0xf]
    %v773 = vld [vmem:[#allocation7 + $0x2c] sm:$0xf]
    %v774 = vld [vmem:[#allocation7 + $0x30] sm:$0xf]
    %v775 = vld [vmem:[#allocation7 + $0x34] sm:$0xf]
    %v776 = vld [vmem:[#allocation7 + $0x38] sm:$0xf]
    %v777 = vld [vmem:[#allocation7 + $0x3c] sm:$0xf]
    %v794 = vunpack.c.l.b16 %v762
    %v795 = vunpack.c.l.b16 %v763
    %v796 = vunpack.c.l.b16 %v764
    %v797 = vunpack.c.l.b16 %v765
    %v798 = vunpack.c.l.b16 %v766
    %v799 = vunpack.c.l.b16 %v767
    %v800 = vunpack.c.l.b16 %v768
    %v801 = vunpack.c.l.b16 %v769
    %v802 = vunpack.c.l.b16 %v770
    %v803 = vunpack.c.l.b16 %v771
    %v804 = vunpack.c.l.b16 %v772
    %v805 = vunpack.c.l.b16 %v773
    %v806 = vunpack.c.l.b16 %v774
    %v807 = vunpack.c.l.b16 %v775
    %v808 = vunpack.c.l.b16 %v776
    %v809 = vunpack.c.l.b16 %v777
    %v810 = vpack.c.b16 %v795, %v794
    %v811 = vpack.c.b16 %v797, %v796
    %v812 = vpack.c.b16 %v799, %v798
    %v813 = vpack.c.b16 %v801, %v800
    %v814 = vpack.c.b16 %v803, %v802
    %v815 = vpack.c.b16 %v805, %v804
    %v816 = vpack.c.b16 %v807, %v806
    %v817 = vpack.c.b16 %v809, %v808
    %826 = vmatprep.subr.bf16.mxu0 0
    %827 = vmatpush1.bf16.msra.mxu0 %v817
    %828 = vmatprep.subr.bf16.mxu0 0
    %829 = vmatpush1.bf16.msra.mxu0 %v816
    %830 = vmatprep.subr.bf16.mxu0 0
    %831 = vmatpush1.bf16.msra.mxu0 %v815
    %832 = vmatprep.subr.bf16.mxu0 0
    %833 = vmatpush1.bf16.msra.mxu0 %v814
    %834 = vmatprep.subr.bf16.mxu0 0
    %835 = vmatpush1.bf16.msra.mxu0 %v813
    %836 = vmatprep.subr.bf16.mxu0 0
    %837 = vmatpush1.bf16.msra.mxu0 %v812
    %838 = vmatprep.subr.bf16.mxu0 0
    %839 = vmatpush1.bf16.msra.mxu0 %v811
    %840 = vmatprep.subr.bf16.mxu0 0
    %841 = vmatpush1.bf16.msra.mxu0 %v810
    %842 = vmatprep.subr.bf16.mxu0 0
    %843 = vmatpush2.bf16.msra.mxu0 0
    %844 = vmatprep.subr.bf16.mxu0 0
    %845 = vmatpush2.bf16.msra.mxu0 0
    %846 = vmatprep.subr.bf16.mxu0 0
    %847 = vmatpush2.bf16.msra.mxu0 0
    %848 = vmatprep.subr.bf16.mxu0 0
    %849 = vmatpush2.bf16.msra.mxu0 0
    %850 = vmatprep.subr.bf16.mxu0 0
    %851 = vmatpush2.bf16.msra.mxu0 0
    %852 = vmatprep.subr.bf16.mxu0 0
    %853 = vmatpush2.bf16.msra.mxu0 0
    %854 = vmatprep.subr.bf16.mxu0 0
    %855 = vmatpush2.bf16.msra.mxu0 0
    %856 = vmatprep.subr.bf16.mxu0 0
    %857 = vmatpush2.bf16.msra.mxu0 0
    %858 = vmatprep.mubr.bf16.mxu0 0
    %859 = vmatmul.mubr.bf16.gmra.mxu0 %v761
    %v860 = vpop.f32.mrf.mxu0
    %v861 = vadd.f32 0.0, %v860
    %v862 = vpop.f32.mrf.mxu0
    %v863 = vpop.f32.mrf.mxu0
    %v864 = vpop.f32.mrf.mxu0
    %865 = vdwg.mxu0
    %v866 = vmax.f32 %v861, 0.0
    %v867 = vpack.c.bf16 %v866, %v866
    %v868 = vld [vmem:[#allocation8] sm:$0xf]
    %v869 = vld [vmem:[#allocation8 + $0x4] sm:$0xf]
    %v870 = vld [vmem:[#allocation8 + $0x8] sm:$0xf]
    %v871 = vld [vmem:[#allocation8 + $0xc] sm:$0xf]
    %v872 = vld [vmem:[#allocation8 + $0x10] sm:$0xf]
    %v873 = vld [vmem:[#allocation8 + $0x14] sm:$0xf]
    %v874 = vld [vmem:[#allocation8 + $0x18] sm:$0xf]
    %v875 = vld [vmem:[#allocation8 + $0x1c] sm:$0xf]
    %v876 = vld [vmem:[#allocation8 + $0x20] sm:$0xf]
    %v877 = vld [vmem:[#allocation8 + $0x24] sm:$0xf]
    %v878 = vld [vmem:[#allocation8 + $0x28] sm:$0xf]
    %v879 = vld [vmem:[#allocation8 + $0x2c] sm:$0xf]
    %v880 = vld [vmem:[#allocation8 + $0x30] sm:$0xf]
    %v881 = vld [vmem:[#allocation8 + $0x34] sm:$0xf]
    %v882 = vld [vmem:[#allocation8 + $0x38] sm:$0xf]
    %v883 = vld [vmem:[#allocation8 + $0x3c] sm:$0xf]
    %v900 = vunpack.c.l.b16 %v868
    %v901 = vunpack.c.l.b16 %v869
    %v902 = vunpack.c.l.b16 %v870
    %v903 = vunpack.c.l.b16 %v871
    %v904 = vunpack.c.l.b16 %v872
    %v905 = vunpack.c.l.b16 %v873
    %v906 = vunpack.c.l.b16 %v874
    %v907 = vunpack.c.l.b16 %v875
    %v908 = vunpack.c.l.b16 %v876
    %v909 = vunpack.c.l.b16 %v877
    %v910 = vunpack.c.l.b16 %v878
    %v911 = vunpack.c.l.b16 %v879
    %v912 = vunpack.c.l.b16 %v880
    %v913 = vunpack.c.l.b16 %v881
    %v914 = vunpack.c.l.b16 %v882
    %v915 = vunpack.c.l.b16 %v883
    %v916 = vpack.c.b16 %v901, %v900
    %v917 = vpack.c.b16 %v903, %v902
    %v918 = vpack.c.b16 %v905, %v904
    %v919 = vpack.c.b16 %v907, %v906
    %v920 = vpack.c.b16 %v909, %v908
    %v921 = vpack.c.b16 %v911, %v910
    %v922 = vpack.c.b16 %v913, %v912
    %v923 = vpack.c.b16 %v915, %v914
    %932 = vmatprep.subr.bf16.mxu0 0
    %933 = vmatpush1.bf16.msra.mxu0 %v923
    %934 = vmatprep.subr.bf16.mxu0 0
    %935 = vmatpush1.bf16.msra.mxu0 %v922
    %936 = vmatprep.subr.bf16.mxu0 0
    %937 = vmatpush1.bf16.msra.mxu0 %v921
    %938 = vmatprep.subr.bf16.mxu0 0
    %939 = vmatpush1.bf16.msra.mxu0 %v920
    %940 = vmatprep.subr.bf16.mxu0 0
    %941 = vmatpush1.bf16.msra.mxu0 %v919
    %942 = vmatprep.subr.bf16.mxu0 0
    %943 = vmatpush1.bf16.msra.mxu0 %v918
    %944 = vmatprep.subr.bf16.mxu0 0
    %945 = vmatpush1.bf16.msra.mxu0 %v917
    %946 = vmatprep.subr.bf16.mxu0 0
    %947 = vmatpush1.bf16.msra.mxu0 %v916
    %948 = vmatprep.subr.bf16.mxu0 0
    %949 = vmatpush2.bf16.msra.mxu0 0
    %950 = vmatprep.subr.bf16.mxu0 0
    %951 = vmatpush2.bf16.msra.mxu0 0
    %952 = vmatprep.subr.bf16.mxu0 0
    %953 = vmatpush2.bf16.msra.mxu0 0
    %954 = vmatprep.subr.bf16.mxu0 0
    %955 = vmatpush2.bf16.msra.mxu0 0
    %956 = vmatprep.subr.bf16.mxu0 0
    %957 = vmatpush2.bf16.msra.mxu0 0
    %958 = vmatprep.subr.bf16.mxu0 0
    %959 = vmatpush2.bf16.msra.mxu0 0
    %960 = vmatprep.subr.bf16.mxu0 0
    %961 = vmatpush2.bf16.msra.mxu0 0
    %962 = vmatprep.subr.bf16.mxu0 0
    %963 = vmatpush2.bf16.msra.mxu0 0
    %964 = vmatprep.mubr.bf16.mxu0 0
    %965 = vmatmul.mubr.bf16.gmra.mxu0 %v867
    %v966 = vpop.f32.mrf.mxu0
    %v967 = vadd.f32 0.0, %v966
    %v968 = vpop.f32.mrf.mxu0
    %v969 = vpop.f32.mrf.mxu0
    %v970 = vpop.f32.mrf.mxu0
    %971 = vdwg.mxu0
    %972 = vst [vmem:[#allocation10] sm:$0xff] %v967
    // Predicated region
    $region34: #{tpu_custom_call.1} parent=1 // pred_check
      _
    $region35: #{tpu_custom_call.1} parent=1 // pred_check_branch
      %974 = sbr.rel (0) target = $region37
    $region36: #{tpu_custom_call.1} parent=1 // pred_region
      %s976 = ssub.s32 128, 128
      %977 = vsyncadd [#allocation4], %s976
      %s979 = sshll.u32 [#allocation10], 4
      %s980 = int_to_ptr.vmem [resolvable:$true] %s979
      %982 = dma.vmem_to_hbm [thread:$0]  %s980, 128, %s4, [#allocation4]
    $region37: #{tpu_custom_call.1} parent=1 // pred_fallthru
      _
    // Predicated region
    $region38: #{tpu_custom_call.1} parent=1 // pred_check
      _
    $region39: #{tpu_custom_call.1} parent=1 // pred_check_branch
      %984 = sbr.rel (0) target = $region41
    $region40: #{tpu_custom_call.1} parent=1 // pred_region
      %985 = dma.done [#allocation4], 128
    $region41: #{tpu_custom_call.1} parent=1 // pred_fallthru
      _
    %986 = vsyncpa [#allocation3], 1
    %987 = vsyncpa [#allocation6], 1
    %988 = vsyncpa [#allocation9], 1
    %989 = vsyncpa [#allocation4], 1

</llo_original>
